<compile_context>
chip_gen: v6e
topology: v6e:2x2x1
jax: 0.10.0
libtpu: 0.0.40
codegen_flags: <defaults>
</compile_context>

<pallas_src>
import functools

import jax
import jax.numpy as jnp
from jax.experimental import pallas as pl
from jax.experimental.pallas import tpu as pltpu


def _round_up(n: int, m: int) -> int:
    return ((n + m - 1) // m) * m


def mlp_kernel(x_ref, w1_ref, b1_ref, w2_ref, b2_ref, w3_ref, b3_ref, o_ref):
    # In-kernel cast of the f32 x tile to the matmul dtype (hides under MXU).
    x = x_ref[...].astype(w1_ref.dtype)
    # fc1 + ReLU: f32 accumulation, fused epilogue so the f32 intermediate
    # dies immediately and only the bf16 copy stays live.
    h = jnp.dot(x, w1_ref[...], preferred_element_type=jnp.float32)
    h = jnp.maximum(h + b1_ref[...], 0.0).astype(w2_ref.dtype)
    # fc2 + ReLU
    h = jnp.dot(h, w2_ref[...], preferred_element_type=jnp.float32)
    h = jnp.maximum(h + b2_ref[...], 0.0).astype(w3_ref.dtype)
    # fc3 (no activation)
    out = jnp.dot(h, w3_ref[...], preferred_element_type=jnp.float32)
    o_ref[...] = (out + b3_ref[...]).astype(o_ref.dtype)


def prepare_params(params, compute_dtype=jnp.bfloat16):
    """One-time pad + cast of the static weights (outside the forward jit).

    Weight layout is (in_features, out_features), i.e. the transpose of
    PyTorch's Linear weight, so the kernel computes y = x @ W + b directly.
    fc3's output dim is zero-padded to a multiple of 128 for lane-dense stores.
    Returns (prepared_params, num_out).
    """
    num_out = params["w3"].shape[1]
    n_pad = _round_up(num_out, 128)
    prepared = dict(
        w1=params["w1"].astype(compute_dtype),
        b1=params["b1"].astype(jnp.float32),
        w2=params["w2"].astype(compute_dtype),
        b2=params["b2"].astype(jnp.float32),
        w3=jnp.pad(params["w3"], ((0, 0), (0, n_pad - num_out))).astype(compute_dtype),
        b3=jnp.pad(params["b3"], ((0, 0), (0, n_pad - num_out))).astype(jnp.float32),
    )
    return prepared, num_out


@functools.partial(jax.jit, static_argnames=("num_out", "tm"))
def two_layer_fc(x, prepared, *, num_out, tm=512):
    """Fused 3-layer MLP forward.

    x: (B, num_in) float32.
    prepared: output of prepare_params (pre-padded / pre-cast weights).
    """
    w1, b1 = prepared["w1"], prepared["b1"]
    w2, b2 = prepared["w2"], prepared["b2"]
    w3, b3 = prepared["w3"], prepared["b3"]

    B, num_in = x.shape
    hidden = w1.shape[1]
    n_pad = w3.shape[1]

    # Row tile: >= 128 rows, <= tm, and split into >= 2 blocks when the padded
    # batch allows so both v7x TensorCores get work on the "parallel" axis.
    b128 = _round_up(B, 128)
    tm_eff = min(tm, b128)
    if b128 >= 2 * 128:
        tm_eff = min(tm_eff, _round_up(b128 // 2, 128))
    grid_m = -(-b128 // tm_eff)
    b_pad = grid_m * tm_eff

    # Only batch-row padding in the hot path (zero rows; sliced off below).
    xp = jnp.pad(x, ((0, b_pad - B), (0, 0)))

    def resident(shape):
        # Same block every grid step -> single buffer (no wasted double-buffer).
        return pl.BlockSpec(shape, lambda i: (0, 0), pipeline_mode=pl.Buffered(1))

    # Explicit VMEM budget: 1x resident weights + double-buffered x/out tiles
    # + headroom for f32 intermediates; clamp to the v7x 64 MiB ceiling.
    wdt = jnp.dtype(w1.dtype).itemsize
    weight_bytes = ((w1.size + w2.size + w3.size) * wdt
                    + (b1.size + b2.size + b3.size) * 4)
    tile_bytes = 2 * tm_eff * num_in * 4 + 2 * tm_eff * n_pad * 4
    scratch_bytes = 4 * tm_eff * max(hidden, n_pad) * 4
    vmem_limit = int(min(64 * 1024 * 1024,
                         weight_bytes + tile_bytes + scratch_bytes + (8 << 20)))

    flops = 2 * b_pad * (num_in * hidden + hidden * hidden + hidden * n_pad)
    bytes_accessed = b_pad * num_in * 4 + weight_bytes + b_pad * n_pad * 4

    out_padded = pl.pallas_call(
        mlp_kernel,
        out_shape=jax.ShapeDtypeStruct((b_pad, n_pad), x.dtype),
        grid=(grid_m,),
        in_specs=[
            pl.BlockSpec((tm_eff, num_in), lambda i: (i, 0)),   # x tile (f32)
            resident(w1.shape), resident(b1.shape),
            resident(w2.shape), resident(b2.shape),
            resident(w3.shape), resident(b3.shape),
        ],
        out_specs=pl.BlockSpec((tm_eff, n_pad), lambda i: (i, 0)),
        compiler_params=pltpu.CompilerParams(
            dimension_semantics=("parallel",),
            vmem_limit_bytes=vmem_limit),
        cost_estimate=pl.CostEstimate(
            flops=int(flops), transcendentals=0,
            bytes_accessed=int(bytes_accessed)),
    )(xp, w1, b1, w2, b2, w3, b3)

    return out_padded[:B, :num_out]


def init_params(key, num_in, num_out, hidden_dim, dtype=jnp.float32):
    """Deterministic synthetic init (PyTorch-style uniform bounds)."""
    ks = jax.random.split(key, 6)

    def linear(kw, kb, fan_in, fan_out):
        bound = 1.0 / jnp.sqrt(jnp.asarray(fan_in, dtype))
        w = jax.random.uniform(kw, (fan_in, fan_out), dtype, -bound, bound)
        b = jax.random.uniform(kb, (1, fan_out), dtype, -bound, bound)
        return w, b

    w1, b1 = linear(ks[0], ks[1], num_in, hidden_dim)
    w2, b2 = linear(ks[2], ks[3], hidden_dim, hidden_dim)
    w3, b3 = linear(ks[4], ks[5], hidden_dim, num_out)
    return dict(w1=w1, b1=b1, w2=w2, b2=b2, w3=w3, b3=b3)


def reference_forward(x, p, matmul_dtype=jnp.float32):
    """Pure-JAX reference; matmul operands in matmul_dtype, f32 accumulation."""
    def dot(a, w):
        return jnp.dot(a.astype(matmul_dtype), w.astype(matmul_dtype),
                       preferred_element_type=jnp.float32)
    h = jnp.maximum(dot(x, p["w1"]) + p["b1"], 0.0)
    h = jnp.maximum(dot(h, p["w2"]) + p["b2"], 0.0)
    return dot(h, p["w3"]) + p["b3"]


if __name__ == "__main__":
    key = jax.random.PRNGKey(0)
    k_x, k_p, k_x2 = jax.random.split(key, 3)

    batch, num_in, num_out, hidden_dim = 8, 32, 16, 128
    x = jax.random.normal(k_x, (batch, num_in), jnp.float32)
    params = init_params(k_p, num_in, num_out, hidden_dim)

    # One-time weight preparation (pad + cast happen outside the hot path).
    prepared, n_out = prepare_params(params)
    prepared = jax.tree_util.tree_map(jax.block_until_ready, prepared)

    # Small-batch case (single grid step, 128-row padded tile).
    out = jax.block_until_ready(two_layer_fc(x, prepared, num_out=n_out))
    assert out.shape == (batch, num_out), out.shape
    ref_bf16 = reference_forward(x, params, matmul_dtype=jnp.bfloat16)
    ref_f32 = reference_forward(x, params, matmul_dtype=jnp.float32)
    assert jnp.allclose(out, ref_bf16, atol=5e-3, rtol=5e-3), \
        "mismatch vs bf16 reference"
    # TODO(synk): bf16 MXU operands deviate from a pure-f32 PyTorch forward
    # beyond ~1e-2 relative error; loose tolerance documents that choice.
    assert jnp.allclose(out, ref_f32, atol=5e-2, rtol=5e-2), \
        "mismatch vs f32 reference"

    # Multi-tile case: exercises the batch grid (>=2 parallel blocks), batch
    # padding, and single-buffered weight residency across grid steps.
    batch2 = 260
    x2 = jax.random.normal(k_x2, (batch2, num_in), jnp.float32)
    out2 = jax.block_until_ready(two_layer_fc(x2, prepared, num_out=n_out, tm=128))
    assert out2.shape == (batch2, num_out), out2.shape
    ref2 = reference_forward(x2, params, matmul_dtype=jnp.bfloat16)
    assert jnp.allclose(out2, ref2, atol=5e-3, rtol=5e-3), \
        "mismatch vs bf16 reference (tiled batch)"

    print("KERNEL_OK")
</pallas_src>

<mosaic_0001>
module attributes {stable_mosaic.version = 11 : i64} {
  func.func @mlp_kernel(%arg0: i32, %arg1: memref<128x32xf32, #tpu.memory_space<vmem>>, %arg2: memref<32x128xbf16, #tpu.memory_space<vmem>>, %arg3: memref<1x128xf32, #tpu.memory_space<vmem>>, %arg4: memref<128x128xbf16, #tpu.memory_space<vmem>>, %arg5: memref<1x128xf32, #tpu.memory_space<vmem>>, %arg6: memref<128x128xbf16, #tpu.memory_space<vmem>>, %arg7: memref<1x128xf32, #tpu.memory_space<vmem>>, %arg8: memref<128x128xf32, #tpu.memory_space<vmem>>) attributes {dimension_semantics = [#tpu.dimension_semantics<parallel>], iteration_bounds = array<i64: 1>, scalar_prefetch = 0 : i64, scratch_operands = 0 : i64, tpu.core_type = #tpu.core_type<tc>, window_params = [{transform_indices = @transform_0, window_bounds = array<i64: 128, 32>}, {pipeline_mode = #tpu.pipeline_mode<synchronous>, transform_indices = @transform_1, window_bounds = array<i64: 32, 128>}, {pipeline_mode = #tpu.pipeline_mode<synchronous>, transform_indices = @transform_2, window_bounds = array<i64: 1, 128>}, {pipeline_mode = #tpu.pipeline_mode<synchronous>, transform_indices = @transform_3, window_bounds = array<i64: 128, 128>}, {pipeline_mode = #tpu.pipeline_mode<synchronous>, transform_indices = @transform_4, window_bounds = array<i64: 1, 128>}, {pipeline_mode = #tpu.pipeline_mode<synchronous>, transform_indices = @transform_5, window_bounds = array<i64: 128, 128>}, {pipeline_mode = #tpu.pipeline_mode<synchronous>, transform_indices = @transform_6, window_bounds = array<i64: 1, 128>}, {transform_indices = @transform_7, window_bounds = array<i64: 128, 128>}]} {
    %c0 = arith.constant 0 : index
    %c0_0 = arith.constant 0 : index
    %0 = vector.load %arg1[%c0, %c0_0] : memref<128x32xf32, #tpu.memory_space<vmem>>, vector<128x32xf32>
    %1 = arith.truncf %0 : vector<128x32xf32> to vector<128x32xbf16>
    %c0_1 = arith.constant 0 : index
    %c0_2 = arith.constant 0 : index
    %2 = vector.load %arg2[%c0_1, %c0_2] : memref<32x128xbf16, #tpu.memory_space<vmem>>, vector<32x128xbf16>
    %cst = arith.constant dense<0.000000e+00> : vector<128x128xf32>
    %3 = tpu.matmul %1, %2, %cst {dimension_numbers = #tpu.dot_dimension_numbers<[1], [0], [0], [1], [0, 0, 1, 1], [], []>} : vector<128x32xbf16>, vector<32x128xbf16>, vector<128x128xf32> -> vector<128x128xf32>
    %c0_3 = arith.constant 0 : index
    %c0_4 = arith.constant 0 : index
    %4 = vector.load %arg3[%c0_3, %c0_4] : memref<1x128xf32, #tpu.memory_space<vmem>>, vector<1x128xf32>
    %5 = vector.broadcast %4 : vector<1x128xf32> to vector<128x128xf32>
    %6 = arith.addf %3, %5 : vector<128x128xf32>
    %cst_5 = arith.constant 0.000000e+00 : f32
    %7 = vector.broadcast %cst_5 : f32 to vector<128x128xf32>
    %8 = arith.maximumf %6, %7 : vector<128x128xf32>
    %9 = arith.truncf %8 : vector<128x128xf32> to vector<128x128xbf16>
    %c0_6 = arith.constant 0 : index
    %c0_7 = arith.constant 0 : index
    %10 = vector.load %arg4[%c0_6, %c0_7] : memref<128x128xbf16, #tpu.memory_space<vmem>>, vector<128x128xbf16>
    %cst_8 = arith.constant dense<0.000000e+00> : vector<128x128xf32>
    %11 = tpu.matmul %9, %10, %cst_8 {dimension_numbers = #tpu.dot_dimension_numbers<[1], [0], [0], [1], [0, 0, 1, 1], [], []>} : vector<128x128xbf16>, vector<128x128xbf16>, vector<128x128xf32> -> vector<128x128xf32>
    %c0_9 = arith.constant 0 : index
    %c0_10 = arith.constant 0 : index
    %12 = vector.load %arg5[%c0_9, %c0_10] : memref<1x128xf32, #tpu.memory_space<vmem>>, vector<1x128xf32>
    %13 = vector.broadcast %12 : vector<1x128xf32> to vector<128x128xf32>
    %14 = arith.addf %11, %13 : vector<128x128xf32>
    %cst_11 = arith.constant 0.000000e+00 : f32
    %15 = vector.broadcast %cst_11 : f32 to vector<128x128xf32>
    %16 = arith.maximumf %14, %15 : vector<128x128xf32>
    %17 = arith.truncf %16 : vector<128x128xf32> to vector<128x128xbf16>
    %c0_12 = arith.constant 0 : index
    %c0_13 = arith.constant 0 : index
    %18 = vector.load %arg6[%c0_12, %c0_13] : memref<128x128xbf16, #tpu.memory_space<vmem>>, vector<128x128xbf16>
    %cst_14 = arith.constant dense<0.000000e+00> : vector<128x128xf32>
    %19 = tpu.matmul %17, %18, %cst_14 {dimension_numbers = #tpu.dot_dimension_numbers<[1], [0], [0], [1], [0, 0, 1, 1], [], []>} : vector<128x128xbf16>, vector<128x128xbf16>, vector<128x128xf32> -> vector<128x128xf32>
    %c0_15 = arith.constant 0 : index
    %c0_16 = arith.constant 0 : index
    %20 = vector.load %arg7[%c0_15, %c0_16] : memref<1x128xf32, #tpu.memory_space<vmem>>, vector<1x128xf32>
    %21 = vector.broadcast %20 : vector<1x128xf32> to vector<128x128xf32>
    %22 = arith.addf %19, %21 : vector<128x128xf32>
    %c0_17 = arith.constant 0 : index
    %c0_18 = arith.constant 0 : index
    %23 = vector.load %arg8[%c0_17, %c0_18] : memref<128x128xf32, #tpu.memory_space<vmem>>, vector<128x128xf32>
    tpu.vector_store %arg8[%c0_17, %c0_18], %22 {strides = array<i32>} : memref<128x128xf32, #tpu.memory_space<vmem>>, vector<128x128xf32>,
    return
  }
  func.func @transform_0(%arg0: i32) -> (i32, i32) {
    %c0_i32 = arith.constant 0 : i32
    %c0_i32_0 = arith.constant 0 : i32
    return %arg0, %c0_i32 : i32, i32
  }
  func.func @transform_1(%arg0: i32) -> (i32, i32) {
    %c0_i32 = arith.constant 0 : i32
    %c0_i32_0 = arith.constant 0 : i32
    %c0_i32_1 = arith.constant 0 : i32
    return %c0_i32, %c0_i32_0 : i32, i32
  }
  func.func @transform_2(%arg0: i32) -> (i32, i32) {
    %c0_i32 = arith.constant 0 : i32
    %c0_i32_0 = arith.constant 0 : i32
    %c0_i32_1 = arith.constant 0 : i32
    return %c0_i32, %c0_i32_0 : i32, i32
  }
  func.func @transform_3(%arg0: i32) -> (i32, i32) {
    %c0_i32 = arith.constant 0 : i32
    %c0_i32_0 = arith.constant 0 : i32
    %c0_i32_1 = arith.constant 0 : i32
    return %c0_i32, %c0_i32_0 : i32, i32
  }
  func.func @transform_4(%arg0: i32) -> (i32, i32) {
    %c0_i32 = arith.constant 0 : i32
    %c0_i32_0 = arith.constant 0 : i32
    %c0_i32_1 = arith.constant 0 : i32
    return %c0_i32, %c0_i32_0 : i32, i32
  }
  func.func @transform_5(%arg0: i32) -> (i32, i32) {
    %c0_i32 = arith.constant 0 : i32
    %c0_i32_0 = arith.constant 0 : i32
    %c0_i32_1 = arith.constant 0 : i32
    return %c0_i32, %c0_i32_0 : i32, i32
  }
  func.func @transform_6(%arg0: i32) -> (i32, i32) {
    %c0_i32 = arith.constant 0 : i32
    %c0_i32_0 = arith.constant 0 : i32
    %c0_i32_1 = arith.constant 0 : i32
    return %c0_i32, %c0_i32_0 : i32, i32
  }
  func.func @transform_7(%arg0: i32) -> (i32, i32) {
    %c0_i32 = arith.constant 0 : i32
    %c0_i32_0 = arith.constant 0 : i32
    return %arg0, %c0_i32 : i32, i32
  }
}

</mosaic_0001>

<llo_original>
// kernel: two_layer_fc.1
$region0: #{two_layer_fc.1}
  #allocation0 [shape = 'u32[]', space=smem, size = 0x4, offset = 0x4, fixed_abs, tag = 'smem constant byte address 0x4 - core index']
  #allocation1 [shape = 'u32[144,128]{1,0:T(1,128)}', space=vmem, size = 0x12000, scoped, tag = 'internal scratch']
  %s0 = inlined_call_operand.vmem [shape: f32[128,32], index: 0, kind: input, shape index: {}]
  %s1 = inlined_call_operand.vmem [shape: bf16[32,128], index: 1, kind: input, shape index: {}]
  %s2 = inlined_call_operand.hbm [shape: f32[1,128], index: 2, kind: input, shape index: {}]
  %s3 = inlined_call_operand.vmem [shape: bf16[128,128], index: 3, kind: input, shape index: {}]
  %s4 = inlined_call_operand.hbm [shape: f32[1,128], index: 4, kind: input, shape index: {}]
  %s5 = inlined_call_operand.vmem [shape: bf16[128,128], index: 5, kind: input, shape index: {}]
  %s6 = inlined_call_operand.hbm [shape: f32[1,128], index: 6, kind: input, shape index: {}]
  %s7 = inlined_call_operand.vmem [shape: f32[128,128], index: 7, kind: output, shape index: {}]
  %s8 = sld [smem:[#allocation0]]
  $region50: #{two_layer_fc.1} parent=0
    _
  %s10 = ssub.s32 1, %s8
  %s11 = scalar_select 0, %s10, %s8
  $region1: #{two_layer_fc.1} parent=0
    #allocation2 [shape = 'u8[512]{0}', space=vmem, size = 0x400, scoped, tag = 'input window, operand 2, single buffered']
    #allocation3 [shape = 's32[1]{0}', space=sflag, size = 0x4, scoped, tag = 'scoped memory for two_layer_fc.1']
    #allocation4 [shape = 'u8[512]{0}', space=vmem, size = 0x400, scoped, tag = 'input window, operand 4, single buffered']
    #allocation5 [shape = 's32[1]{0}', space=sflag, size = 0x4, scoped, tag = 'scoped memory for two_layer_fc.1']
    #allocation6 [shape = 'u8[512]{0}', space=vmem, size = 0x400, scoped, tag = 'input window, operand 6, single buffered']
    %12 = vsyncpa [#allocation3], 0
    %13 = vsyncpa [#allocation5], 0
    // Predicated region
    $region2: #{two_layer_fc.1} parent=1 // pred_check
      _
    $region3: #{two_layer_fc.1} parent=1 // pred_check_branch
      %15 = sbr.rel (0) target = $region5
    $region4: #{two_layer_fc.1} parent=1 // pred_region
      _
    $region5: #{two_layer_fc.1} parent=1 // pred_fallthru
      _
    // Predicated region
    $region6: #{two_layer_fc.1} parent=1 // pred_check
      _
    $region7: #{two_layer_fc.1} parent=1 // pred_check_branch
      %17 = sbr.rel (0) target = $region9
    $region8: #{two_layer_fc.1} parent=1 // pred_region
      _
    $region9: #{two_layer_fc.1} parent=1 // pred_fallthru
      _
    // Predicated region
    $region10: #{two_layer_fc.1} parent=1 // pred_check
      _
    $region11: #{two_layer_fc.1} parent=1 // pred_check_branch
      %19 = sbr.rel (0) target = $region13
    $region12: #{two_layer_fc.1} parent=1 // pred_region
      %s21 = ssub.s32 16, 16
      %22 = vsyncadd [#allocation3], %s21
      %s24 = sshll.u32 [#allocation2], 4
      %s25 = int_to_ptr.vmem [resolvable:$true] %s24
      %27 = dma.hbm_to_vmem [thread:$0]  %s2, 16, %s25, [#allocation3]
    $region13: #{two_layer_fc.1} parent=1 // pred_fallthru
      _
    // Predicated region
    $region14: #{two_layer_fc.1} parent=1 // pred_check
      _
    $region15: #{two_layer_fc.1} parent=1 // pred_check_branch
      %29 = sbr.rel (0) target = $region17
    $region16: #{two_layer_fc.1} parent=1 // pred_region
      _
    $region17: #{two_layer_fc.1} parent=1 // pred_fallthru
      _
    // Predicated region
    $region18: #{two_layer_fc.1} parent=1 // pred_check
      _
    $region19: #{two_layer_fc.1} parent=1 // pred_check_branch
      %31 = sbr.rel (0) target = $region21
    $region20: #{two_layer_fc.1} parent=1 // pred_region
      %s33 = ssub.s32 16, 16
      %34 = vsyncadd [#allocation5], %s33
      %s36 = sshll.u32 [#allocation4], 4
      %s37 = int_to_ptr.vmem [resolvable:$true] %s36
      %39 = dma.hbm_to_vmem [thread:$0]  %s4, 16, %s37, [#allocation5]
    $region21: #{two_layer_fc.1} parent=1 // pred_fallthru
      _
    // Predicated region
    $region22: #{two_layer_fc.1} parent=1 // pred_check
      _
    $region23: #{two_layer_fc.1} parent=1 // pred_check_branch
      %41 = sbr.rel (0) target = $region25
    $region24: #{two_layer_fc.1} parent=1 // pred_region
      _
    $region25: #{two_layer_fc.1} parent=1 // pred_fallthru
      _
    // Predicated region
    $region26: #{two_layer_fc.1} parent=1 // pred_check
      _
    $region27: #{two_layer_fc.1} parent=1 // pred_check_branch
      %43 = sbr.rel (0) target = $region29
    $region28: #{two_layer_fc.1} parent=1 // pred_region
      %s45 = ssub.s32 16, 16
      %46 = vsyncadd [#allocation5], %s45
      %s48 = sshll.u32 [#allocation6], 4
      %s49 = int_to_ptr.vmem [resolvable:$true] %s48
      %51 = dma.hbm_to_vmem [thread:$0]  %s6, 16, %s49, [#allocation5]
    $region29: #{two_layer_fc.1} parent=1 // pred_fallthru
      _
    // Predicated region
    $region30: #{two_layer_fc.1} parent=1 // pred_check
      _
    $region31: #{two_layer_fc.1} parent=1 // pred_check_branch
      %53 = sbr.rel (0) target = $region33
    $region32: #{two_layer_fc.1} parent=1 // pred_region
      %54 = dma.done [#allocation3], 16
    $region33: #{two_layer_fc.1} parent=1 // pred_fallthru
      _
    // Predicated region
    $region34: #{two_layer_fc.1} parent=1 // pred_check
      _
    $region35: #{two_layer_fc.1} parent=1 // pred_check_branch
      %56 = sbr.rel (0) target = $region37
    $region36: #{two_layer_fc.1} parent=1 // pred_region
      %57 = dma.done [#allocation5], 16
    $region37: #{two_layer_fc.1} parent=1 // pred_fallthru
      _
    // Predicated region
    $region38: #{two_layer_fc.1} parent=1 // pred_check
      _
    $region39: #{two_layer_fc.1} parent=1 // pred_check_branch
      %59 = sbr.rel (0) target = $region41
    $region40: #{two_layer_fc.1} parent=1 // pred_region
      %60 = dma.done [#allocation5], 16
    $region41: #{two_layer_fc.1} parent=1 // pred_fallthru
      _
    %v62 = vld [vmem:[%s0] sm:$0xff]
    %v63 = vld [vmem:[%s0 + $0x8] sm:$0xff]
    %v64 = vld [vmem:[%s0 + $0x10] sm:$0xff]
    %v65 = vld [vmem:[%s0 + $0x18] sm:$0xff]
    %v66 = vld [vmem:[%s0 + $0x20] sm:$0xff]
    %v67 = vld [vmem:[%s0 + $0x28] sm:$0xff]
    %v68 = vld [vmem:[%s0 + $0x30] sm:$0xff]
    %v69 = vld [vmem:[%s0 + $0x38] sm:$0xff]
    %v70 = vld [vmem:[%s0 + $0x40] sm:$0xff]
    %v71 = vld [vmem:[%s0 + $0x48] sm:$0xff]
    %v72 = vld [vmem:[%s0 + $0x50] sm:$0xff]
    %v73 = vld [vmem:[%s0 + $0x58] sm:$0xff]
    %v74 = vld [vmem:[%s0 + $0x60] sm:$0xff]
    %v75 = vld [vmem:[%s0 + $0x68] sm:$0xff]
    %v76 = vld [vmem:[%s0 + $0x70] sm:$0xff]
    %v77 = vld [vmem:[%s0 + $0x78] sm:$0xff]
    %v78 = vpack.c.bf16 %v63, %v62
    %v79 = vpack.c.bf16 %v65, %v64
    %v80 = vpack.c.bf16 %v67, %v66
    %v81 = vpack.c.bf16 %v69, %v68
    %v82 = vpack.c.bf16 %v71, %v70
    %v83 = vpack.c.bf16 %v73, %v72
    %v84 = vpack.c.bf16 %v75, %v74
    %v85 = vpack.c.bf16 %v77, %v76
    %v86 = vld [vmem:[%s1] sm:$0xf]
    %v87 = vld [vmem:[%s1 + $0x4] sm:$0xf]
    %v88 = vld [vmem:[%s1 + $0x8] sm:$0xf]
    %v89 = vld [vmem:[%s1 + $0xc] sm:$0xf]
    %v90 = vld [vmem:[#allocation2] sm:$0x1]
    %v92 = vlaneseq
    %v93 = vshrl.u32 %v92, 7
    %v94 = vsub.s32 0, %v93
    %v95 = vrot.slane %v90, %v94
    %v101 = vunpack.c.l.b16 %v86
    %v102 = vunpack.c.l.b16 %v87
    %v103 = vunpack.c.l.b16 %v88
    %v104 = vunpack.c.l.b16 %v89
    %v105 = vpack.c.b16 %v102, %v101
    %v106 = vpack.c.b16 %v104, %v103
    %vm109 = vcmask 261120
    %v111 = vsel %vm109, %v78, 0
    %v114 = vsel %vm109, %v79, 0
    %v117 = vsel %vm109, %v80, 0
    %v120 = vsel %vm109, %v81, 0
    %v123 = vsel %vm109, %v82, 0
    %v126 = vsel %vm109, %v83, 0
    %v129 = vsel %vm109, %v84, 0
    %v132 = vsel %vm109, %v85, 0
    %134 = vmatprep.subr.bf16.mxu0 0
    %135 = vmatpush1.bf16.msra.mxu0 0
    %136 = vmatprep.subr.bf16.mxu0 0
    %137 = vmatpush1.bf16.msra.mxu0 0
    %138 = vmatprep.subr.bf16.mxu0 0
    %139 = vmatpush1.bf16.msra.mxu0 0
    %140 = vmatprep.subr.bf16.mxu0 0
    %141 = vmatpush1.bf16.msra.mxu0 0
    %142 = vmatprep.subr.bf16.mxu0 0
    %143 = vmatpush1.bf16.msra.mxu0 0
    %144 = vmatprep.subr.bf16.mxu0 0
    %145 = vmatpush1.bf16.msra.mxu0 0
    %146 = vmatprep.subr.bf16.mxu0 0
    %147 = vmatpush1.bf16.msra.mxu0 %v106
    %148 = vmatprep.subr.bf16.mxu0 0
    %149 = vmatpush1.bf16.msra.mxu0 %v105
    %150 = vmatprep.subr.bf16.mxu0 0
    %151 = vmatpush2.bf16.msra.mxu0 0
    %152 = vmatprep.subr.bf16.mxu0 0
    %153 = vmatpush2.bf16.msra.mxu0 0
    %154 = vmatprep.subr.bf16.mxu0 0
    %155 = vmatpush2.bf16.msra.mxu0 0
    %156 = vmatprep.subr.bf16.mxu0 0
    %157 = vmatpush2.bf16.msra.mxu0 0
    %158 = vmatprep.subr.bf16.mxu0 0
    %159 = vmatpush2.bf16.msra.mxu0 0
    %160 = vmatprep.subr.bf16.mxu0 0
    %161 = vmatpush2.bf16.msra.mxu0 0
    %162 = vmatprep.subr.bf16.mxu0 0
    %163 = vmatpush2.bf16.msra.mxu0 0
    %164 = vmatprep.subr.bf16.mxu0 0
    %165 = vmatpush2.bf16.msra.mxu0 0
    %166 = vmatprep.mubr.bf16.mxu0 0
    %167 = vmatmul.mubr.bf16.gmra.mxu0 %v111
    %v168 = vpop.f32.mrf.mxu0
    %v169 = vadd.f32 %v95, %v168
    %v170 = vpop.f32.mrf.mxu0
    %v171 = vpop.f32.mrf.mxu0
    %v172 = vadd.f32 %v95, %v171
    %v173 = vpop.f32.mrf.mxu0
    %174 = vmatprep.mubr.bf16.mxu0 0
    %175 = vmatmul.mubr.bf16.gmra.mxu0 %v114
    %v176 = vpop.f32.mrf.mxu0
    %v177 = vadd.f32 %v95, %v176
    %v178 = vpop.f32.mrf.mxu0
    %v179 = vpop.f32.mrf.mxu0
    %v180 = vadd.f32 %v95, %v179
    %v181 = vpop.f32.mrf.mxu0
    %182 = vmatprep.mubr.bf16.mxu0 0
    %183 = vmatmul.mubr.bf16.gmra.mxu0 %v117
    %v184 = vpop.f32.mrf.mxu0
    %v185 = vadd.f32 %v95, %v184
    %v186 = vpop.f32.mrf.mxu0
    %v187 = vpop.f32.mrf.mxu0
    %v188 = vadd.f32 %v95, %v187
    %v189 = vpop.f32.mrf.mxu0
    %190 = vmatprep.mubr.bf16.mxu0 0
    %191 = vmatmul.mubr.bf16.gmra.mxu0 %v120
    %v192 = vpop.f32.mrf.mxu0
    %v193 = vadd.f32 %v95, %v192
    %v194 = vpop.f32.mrf.mxu0
    %v195 = vpop.f32.mrf.mxu0
    %v196 = vadd.f32 %v95, %v195
    %v197 = vpop.f32.mrf.mxu0
    %198 = vmatprep.mubr.bf16.mxu0 0
    %199 = vmatmul.mubr.bf16.gmra.mxu0 %v123
    %v200 = vpop.f32.mrf.mxu0
    %v201 = vadd.f32 %v95, %v200
    %v202 = vpop.f32.mrf.mxu0
    %v203 = vpop.f32.mrf.mxu0
    %v204 = vadd.f32 %v95, %v203
    %v205 = vpop.f32.mrf.mxu0
    %206 = vmatprep.mubr.bf16.mxu0 0
    %207 = vmatmul.mubr.bf16.gmra.mxu0 %v126
    %v208 = vpop.f32.mrf.mxu0
    %v209 = vadd.f32 %v95, %v208
    %v210 = vpop.f32.mrf.mxu0
    %v211 = vpop.f32.mrf.mxu0
    %v212 = vadd.f32 %v95, %v211
    %v213 = vpop.f32.mrf.mxu0
    %214 = vmatprep.mubr.bf16.mxu0 0
    %215 = vmatmul.mubr.bf16.gmra.mxu0 %v129
    %v216 = vpop.f32.mrf.mxu0
    %v217 = vadd.f32 %v95, %v216
    %v218 = vpop.f32.mrf.mxu0
    %v219 = vpop.f32.mrf.mxu0
    %v220 = vadd.f32 %v95, %v219
    %v221 = vpop.f32.mrf.mxu0
    %222 = vmatprep.mubr.bf16.mxu0 0
    %223 = vmatmul.mubr.bf16.gmra.mxu0 %v132
    %v224 = vpop.f32.mrf.mxu0
    %v225 = vadd.f32 %v95, %v224
    %v226 = vpop.f32.mrf.mxu0
    %v227 = vpop.f32.mrf.mxu0
    %v228 = vadd.f32 %v95, %v227
    %v229 = vpop.f32.mrf.mxu0
    %230 = vdwg.mxu0
    %v231 = vmax.f32 %v169, 0.0
    %v232 = vmax.f32 %v172, 0.0
    %v233 = vmax.f32 %v177, 0.0
    %v234 = vmax.f32 %v180, 0.0
    %v235 = vmax.f32 %v185, 0.0
    %v236 = vmax.f32 %v188, 0.0
    %v237 = vmax.f32 %v193, 0.0
    %v238 = vmax.f32 %v196, 0.0
    %v239 = vmax.f32 %v201, 0.0
    %v240 = vmax.f32 %v204, 0.0
    %v241 = vmax.f32 %v209, 0.0
    %v242 = vmax.f32 %v212, 0.0
    %v243 = vmax.f32 %v217, 0.0
    %v244 = vmax.f32 %v220, 0.0
    %v245 = vmax.f32 %v225, 0.0
    %v246 = vmax.f32 %v228, 0.0
    %v247 = vpack.c.bf16 %v232, %v231
    %v248 = vpack.c.bf16 %v234, %v233
    %v249 = vpack.c.bf16 %v236, %v235
    %v250 = vpack.c.bf16 %v238, %v237
    %v251 = vpack.c.bf16 %v240, %v239
    %v252 = vpack.c.bf16 %v242, %v241
    %v253 = vpack.c.bf16 %v244, %v243
    %v254 = vpack.c.bf16 %v246, %v245
    %v255 = vld [vmem:[%s3] sm:$0xf]
    %v256 = vld [vmem:[%s3 + $0x4] sm:$0xf]
    %v257 = vld [vmem:[%s3 + $0x8] sm:$0xf]
    %v258 = vld [vmem:[%s3 + $0xc] sm:$0xf]
    %v259 = vld [vmem:[%s3 + $0x10] sm:$0xf]
    %v260 = vld [vmem:[%s3 + $0x14] sm:$0xf]
    %v261 = vld [vmem:[%s3 + $0x18] sm:$0xf]
    %v262 = vld [vmem:[%s3 + $0x1c] sm:$0xf]
    %v263 = vld [vmem:[%s3 + $0x20] sm:$0xf]
    %v264 = vld [vmem:[%s3 + $0x24] sm:$0xf]
    %v265 = vld [vmem:[%s3 + $0x28] sm:$0xf]
    %v266 = vld [vmem:[%s3 + $0x2c] sm:$0xf]
    %v267 = vld [vmem:[%s3 + $0x30] sm:$0xf]
    %v268 = vld [vmem:[%s3 + $0x34] sm:$0xf]
    %v269 = vld [vmem:[%s3 + $0x38] sm:$0xf]
    %v270 = vld [vmem:[%s3 + $0x3c] sm:$0xf]
    %v271 = vld [vmem:[#allocation4] sm:$0x1]
    %v273 = vlaneseq
    %v274 = vshrl.u32 %v273, 7
    %v275 = vsub.s32 0, %v274
    %v276 = vrot.slane %v271, %v275
    %v294 = vunpack.c.l.b16 %v255
    %v295 = vunpack.c.l.b16 %v256
    %v296 = vunpack.c.l.b16 %v257
    %v297 = vunpack.c.l.b16 %v258
    %v298 = vunpack.c.l.b16 %v259
    %v299 = vunpack.c.l.b16 %v260
    %v300 = vunpack.c.l.b16 %v261
    %v301 = vunpack.c.l.b16 %v262
    %v302 = vunpack.c.l.b16 %v263
    %v303 = vunpack.c.l.b16 %v264
    %v304 = vunpack.c.l.b16 %v265
    %v305 = vunpack.c.l.b16 %v266
    %v306 = vunpack.c.l.b16 %v267
    %v307 = vunpack.c.l.b16 %v268
    %v308 = vunpack.c.l.b16 %v269
    %v309 = vunpack.c.l.b16 %v270
    %v310 = vpack.c.b16 %v295, %v294
    %v311 = vpack.c.b16 %v297, %v296
    %v312 = vpack.c.b16 %v299, %v298
    %v313 = vpack.c.b16 %v301, %v300
    %v314 = vpack.c.b16 %v303, %v302
    %v315 = vpack.c.b16 %v305, %v304
    %v316 = vpack.c.b16 %v307, %v306
    %v317 = vpack.c.b16 %v309, %v308
    %326 = vmatprep.subr.bf16.mxu0 0
    %327 = vmatpush1.bf16.msra.mxu0 %v317
    %328 = vmatprep.subr.bf16.mxu0 0
    %329 = vmatpush1.bf16.msra.mxu0 %v316
    %330 = vmatprep.subr.bf16.mxu0 0
    %331 = vmatpush1.bf16.msra.mxu0 %v315
    %332 = vmatprep.subr.bf16.mxu0 0
    %333 = vmatpush1.bf16.msra.mxu0 %v314
    %334 = vmatprep.subr.bf16.mxu0 0
    %335 = vmatpush1.bf16.msra.mxu0 %v313
    %336 = vmatprep.subr.bf16.mxu0 0
    %337 = vmatpush1.bf16.msra.mxu0 %v312
    %338 = vmatprep.subr.bf16.mxu0 0
    %339 = vmatpush1.bf16.msra.mxu0 %v311
    %340 = vmatprep.subr.bf16.mxu0 0
    %341 = vmatpush1.bf16.msra.mxu0 %v310
    %342 = vmatprep.subr.bf16.mxu0 0
    %343 = vmatpush2.bf16.msra.mxu0 0
    %344 = vmatprep.subr.bf16.mxu0 0
    %345 = vmatpush2.bf16.msra.mxu0 0
    %346 = vmatprep.subr.bf16.mxu0 0
    %347 = vmatpush2.bf16.msra.mxu0 0
    %348 = vmatprep.subr.bf16.mxu0 0
    %349 = vmatpush2.bf16.msra.mxu0 0
    %350 = vmatprep.subr.bf16.mxu0 0
    %351 = vmatpush2.bf16.msra.mxu0 0
    %352 = vmatprep.subr.bf16.mxu0 0
    %353 = vmatpush2.bf16.msra.mxu0 0
    %354 = vmatprep.subr.bf16.mxu0 0
    %355 = vmatpush2.bf16.msra.mxu0 0
    %356 = vmatprep.subr.bf16.mxu0 0
    %357 = vmatpush2.bf16.msra.mxu0 0
    %358 = vmatprep.mubr.bf16.mxu0 0
    %359 = vmatmul.mubr.bf16.gmra.mxu0 %v247
    %v360 = vpop.f32.mrf.mxu0
    %v361 = vadd.f32 %v276, %v360
    %v362 = vpop.f32.mrf.mxu0
    %v363 = vpop.f32.mrf.mxu0
    %v364 = vadd.f32 %v276, %v363
    %v365 = vpop.f32.mrf.mxu0
    %366 = vmatprep.mubr.bf16.mxu0 0
    %367 = vmatmul.mubr.bf16.gmra.mxu0 %v248
    %v368 = vpop.f32.mrf.mxu0
    %v369 = vadd.f32 %v276, %v368
    %v370 = vpop.f32.mrf.mxu0
    %v371 = vpop.f32.mrf.mxu0
    %v372 = vadd.f32 %v276, %v371
    %v373 = vpop.f32.mrf.mxu0
    %374 = vmatprep.mubr.bf16.mxu0 0
    %375 = vmatmul.mubr.bf16.gmra.mxu0 %v249
    %v376 = vpop.f32.mrf.mxu0
    %v377 = vadd.f32 %v276, %v376
    %v378 = vpop.f32.mrf.mxu0
    %v379 = vpop.f32.mrf.mxu0
    %v380 = vadd.f32 %v276, %v379
    %v381 = vpop.f32.mrf.mxu0
    %382 = vmatprep.mubr.bf16.mxu0 0
    %383 = vmatmul.mubr.bf16.gmra.mxu0 %v250
    %v384 = vpop.f32.mrf.mxu0
    %v385 = vadd.f32 %v276, %v384
    %v386 = vpop.f32.mrf.mxu0
    %v387 = vpop.f32.mrf.mxu0
    %v388 = vadd.f32 %v276, %v387
    %v389 = vpop.f32.mrf.mxu0
    %390 = vmatprep.mubr.bf16.mxu0 0
    %391 = vmatmul.mubr.bf16.gmra.mxu0 %v251
    %v392 = vpop.f32.mrf.mxu0
    %v393 = vadd.f32 %v276, %v392
    %v394 = vpop.f32.mrf.mxu0
    %v395 = vpop.f32.mrf.mxu0
    %v396 = vadd.f32 %v276, %v395
    %v397 = vpop.f32.mrf.mxu0
    %398 = vmatprep.mubr.bf16.mxu0 0
    %399 = vmatmul.mubr.bf16.gmra.mxu0 %v252
    %v400 = vpop.f32.mrf.mxu0
    %v401 = vadd.f32 %v276, %v400
    %v402 = vpop.f32.mrf.mxu0
    %v403 = vpop.f32.mrf.mxu0
    %v404 = vadd.f32 %v276, %v403
    %v405 = vpop.f32.mrf.mxu0
    %406 = vmatprep.mubr.bf16.mxu0 0
    %407 = vmatmul.mubr.bf16.gmra.mxu0 %v253
    %v408 = vpop.f32.mrf.mxu0
    %v409 = vadd.f32 %v276, %v408
    %v410 = vpop.f32.mrf.mxu0
    %v411 = vpop.f32.mrf.mxu0
    %v412 = vadd.f32 %v276, %v411
    %v413 = vpop.f32.mrf.mxu0
    %414 = vmatprep.mubr.bf16.mxu0 0
    %415 = vmatmul.mubr.bf16.gmra.mxu0 %v254
    %v416 = vpop.f32.mrf.mxu0
    %v417 = vadd.f32 %v276, %v416
    %v418 = vpop.f32.mrf.mxu0
    %v419 = vpop.f32.mrf.mxu0
    %v420 = vadd.f32 %v276, %v419
    %v421 = vpop.f32.mrf.mxu0
    %422 = vdwg.mxu0
    %v423 = vmax.f32 %v361, 0.0
    %v424 = vmax.f32 %v364, 0.0
    %v425 = vmax.f32 %v369, 0.0
    %v426 = vmax.f32 %v372, 0.0
    %v427 = vmax.f32 %v377, 0.0
    %v428 = vmax.f32 %v380, 0.0
    %v429 = vmax.f32 %v385, 0.0
    %v430 = vmax.f32 %v388, 0.0
    %v431 = vmax.f32 %v393, 0.0
    %v432 = vmax.f32 %v396, 0.0
    %v433 = vmax.f32 %v401, 0.0
    %v434 = vmax.f32 %v404, 0.0
    %v435 = vmax.f32 %v409, 0.0
    %v436 = vmax.f32 %v412, 0.0
    %v437 = vmax.f32 %v417, 0.0
    %v438 = vmax.f32 %v420, 0.0
    %v439 = vpack.c.bf16 %v424, %v423
    %v440 = vpack.c.bf16 %v426, %v425
    %v441 = vpack.c.bf16 %v428, %v427
    %v442 = vpack.c.bf16 %v430, %v429
    %v443 = vpack.c.bf16 %v432, %v431
    %v444 = vpack.c.bf16 %v434, %v433
    %v445 = vpack.c.bf16 %v436, %v435
    %v446 = vpack.c.bf16 %v438, %v437
    %v447 = vld [vmem:[%s5] sm:$0xf]
    %v448 = vld [vmem:[%s5 + $0x4] sm:$0xf]
    %v449 = vld [vmem:[%s5 + $0x8] sm:$0xf]
    %v450 = vld [vmem:[%s5 + $0xc] sm:$0xf]
    %v451 = vld [vmem:[%s5 + $0x10] sm:$0xf]
    %v452 = vld [vmem:[%s5 + $0x14] sm:$0xf]
    %v453 = vld [vmem:[%s5 + $0x18] sm:$0xf]
    %v454 = vld [vmem:[%s5 + $0x1c] sm:$0xf]
    %v455 = vld [vmem:[%s5 + $0x20] sm:$0xf]
    %v456 = vld [vmem:[%s5 + $0x24] sm:$0xf]
    %v457 = vld [vmem:[%s5 + $0x28] sm:$0xf]
    %v458 = vld [vmem:[%s5 + $0x2c] sm:$0xf]
    %v459 = vld [vmem:[%s5 + $0x30] sm:$0xf]
    %v460 = vld [vmem:[%s5 + $0x34] sm:$0xf]
    %v461 = vld [vmem:[%s5 + $0x38] sm:$0xf]
    %v462 = vld [vmem:[%s5 + $0x3c] sm:$0xf]
    %v463 = vld [vmem:[#allocation6] sm:$0x1]
    %v465 = vlaneseq
    %v466 = vshrl.u32 %v465, 7
    %v467 = vsub.s32 0, %v466
    %v468 = vrot.slane %v463, %v467
    %v486 = vunpack.c.l.b16 %v447
    %v487 = vunpack.c.l.b16 %v448
    %v488 = vunpack.c.l.b16 %v449
    %v489 = vunpack.c.l.b16 %v450
    %v490 = vunpack.c.l.b16 %v451
    %v491 = vunpack.c.l.b16 %v452
    %v492 = vunpack.c.l.b16 %v453
    %v493 = vunpack.c.l.b16 %v454
    %v494 = vunpack.c.l.b16 %v455
    %v495 = vunpack.c.l.b16 %v456
    %v496 = vunpack.c.l.b16 %v457
    %v497 = vunpack.c.l.b16 %v458
    %v498 = vunpack.c.l.b16 %v459
    %v499 = vunpack.c.l.b16 %v460
    %v500 = vunpack.c.l.b16 %v461
    %v501 = vunpack.c.l.b16 %v462
    %v502 = vpack.c.b16 %v487, %v486
    %v503 = vpack.c.b16 %v489, %v488
    %v504 = vpack.c.b16 %v491, %v490
    %v505 = vpack.c.b16 %v493, %v492
    %v506 = vpack.c.b16 %v495, %v494
    %v507 = vpack.c.b16 %v497, %v496
    %v508 = vpack.c.b16 %v499, %v498
    %v509 = vpack.c.b16 %v501, %v500
    %518 = vmatprep.subr.bf16.mxu0 0
    %519 = vmatpush1.bf16.msra.mxu0 %v509
    %520 = vmatprep.subr.bf16.mxu0 0
    %521 = vmatpush1.bf16.msra.mxu0 %v508
    %522 = vmatprep.subr.bf16.mxu0 0
    %523 = vmatpush1.bf16.msra.mxu0 %v507
    %524 = vmatprep.subr.bf16.mxu0 0
    %525 = vmatpush1.bf16.msra.mxu0 %v506
    %526 = vmatprep.subr.bf16.mxu0 0
    %527 = vmatpush1.bf16.msra.mxu0 %v505
    %528 = vmatprep.subr.bf16.mxu0 0
    %529 = vmatpush1.bf16.msra.mxu0 %v504
    %530 = vmatprep.subr.bf16.mxu0 0
    %531 = vmatpush1.bf16.msra.mxu0 %v503
    %532 = vmatprep.subr.bf16.mxu0 0
    %533 = vmatpush1.bf16.msra.mxu0 %v502
    %534 = vmatprep.subr.bf16.mxu0 0
    %535 = vmatpush2.bf16.msra.mxu0 0
    %536 = vmatprep.subr.bf16.mxu0 0
    %537 = vmatpush2.bf16.msra.mxu0 0
    %538 = vmatprep.subr.bf16.mxu0 0
    %539 = vmatpush2.bf16.msra.mxu0 0
    %540 = vmatprep.subr.bf16.mxu0 0
    %541 = vmatpush2.bf16.msra.mxu0 0
    %542 = vmatprep.subr.bf16.mxu0 0
    %543 = vmatpush2.bf16.msra.mxu0 0
    %544 = vmatprep.subr.bf16.mxu0 0
    %545 = vmatpush2.bf16.msra.mxu0 0
    %546 = vmatprep.subr.bf16.mxu0 0
    %547 = vmatpush2.bf16.msra.mxu0 0
    %548 = vmatprep.subr.bf16.mxu0 0
    %549 = vmatpush2.bf16.msra.mxu0 0
    %550 = vmatprep.mubr.bf16.mxu0 0
    %551 = vmatmul.mubr.bf16.gmra.mxu0 %v439
    %v552 = vpop.f32.mrf.mxu0
    %v553 = vadd.f32 %v468, %v552
    %v554 = vpop.f32.mrf.mxu0
    %v555 = vpop.f32.mrf.mxu0
    %v556 = vadd.f32 %v468, %v555
    %v557 = vpop.f32.mrf.mxu0
    %558 = vmatprep.mubr.bf16.mxu0 0
    %559 = vmatmul.mubr.bf16.gmra.mxu0 %v440
    %v560 = vpop.f32.mrf.mxu0
    %v561 = vadd.f32 %v468, %v560
    %v562 = vpop.f32.mrf.mxu0
    %v563 = vpop.f32.mrf.mxu0
    %v564 = vadd.f32 %v468, %v563
    %v565 = vpop.f32.mrf.mxu0
    %566 = vmatprep.mubr.bf16.mxu0 0
    %567 = vmatmul.mubr.bf16.gmra.mxu0 %v441
    %v568 = vpop.f32.mrf.mxu0
    %v569 = vadd.f32 %v468, %v568
    %v570 = vpop.f32.mrf.mxu0
    %v571 = vpop.f32.mrf.mxu0
    %v572 = vadd.f32 %v468, %v571
    %v573 = vpop.f32.mrf.mxu0
    %574 = vmatprep.mubr.bf16.mxu0 0
    %575 = vmatmul.mubr.bf16.gmra.mxu0 %v442
    %v576 = vpop.f32.mrf.mxu0
    %v577 = vadd.f32 %v468, %v576
    %v578 = vpop.f32.mrf.mxu0
    %v579 = vpop.f32.mrf.mxu0
    %v580 = vadd.f32 %v468, %v579
    %v581 = vpop.f32.mrf.mxu0
    %582 = vmatprep.mubr.bf16.mxu0 0
    %583 = vmatmul.mubr.bf16.gmra.mxu0 %v443
    %v584 = vpop.f32.mrf.mxu0
    %v585 = vadd.f32 %v468, %v584
    %v586 = vpop.f32.mrf.mxu0
    %v587 = vpop.f32.mrf.mxu0
    %v588 = vadd.f32 %v468, %v587
    %v589 = vpop.f32.mrf.mxu0
    %590 = vmatprep.mubr.bf16.mxu0 0
    %591 = vmatmul.mubr.bf16.gmra.mxu0 %v444
    %v592 = vpop.f32.mrf.mxu0
    %v593 = vadd.f32 %v468, %v592
    %v594 = vpop.f32.mrf.mxu0
    %v595 = vpop.f32.mrf.mxu0
    %v596 = vadd.f32 %v468, %v595
    %v597 = vpop.f32.mrf.mxu0
    %598 = vmatprep.mubr.bf16.mxu0 0
    %599 = vmatmul.mubr.bf16.gmra.mxu0 %v445
    %v600 = vpop.f32.mrf.mxu0
    %v601 = vadd.f32 %v468, %v600
    %v602 = vpop.f32.mrf.mxu0
    %v603 = vpop.f32.mrf.mxu0
    %v604 = vadd.f32 %v468, %v603
    %v605 = vpop.f32.mrf.mxu0
    %606 = vmatprep.mubr.bf16.mxu0 0
    %607 = vmatmul.mubr.bf16.gmra.mxu0 %v446
    %v608 = vpop.f32.mrf.mxu0
    %v609 = vadd.f32 %v468, %v608
    %v610 = vpop.f32.mrf.mxu0
    %v611 = vpop.f32.mrf.mxu0
    %v612 = vadd.f32 %v468, %v611
    %v613 = vpop.f32.mrf.mxu0
    %614 = vdwg.mxu0
    %615 = vst [vmem:[%s7] sm:$0xff] %v553
    %616 = vst [vmem:[%s7 + $0x8] sm:$0xff] %v556
    %617 = vst [vmem:[%s7 + $0x10] sm:$0xff] %v561
    %618 = vst [vmem:[%s7 + $0x18] sm:$0xff] %v564
    %619 = vst [vmem:[%s7 + $0x20] sm:$0xff] %v569
    %620 = vst [vmem:[%s7 + $0x28] sm:$0xff] %v572
    %621 = vst [vmem:[%s7 + $0x30] sm:$0xff] %v577
    %622 = vst [vmem:[%s7 + $0x38] sm:$0xff] %v580
    %623 = vst [vmem:[%s7 + $0x40] sm:$0xff] %v585
    %624 = vst [vmem:[%s7 + $0x48] sm:$0xff] %v588
    %625 = vst [vmem:[%s7 + $0x50] sm:$0xff] %v593
    %626 = vst [vmem:[%s7 + $0x58] sm:$0xff] %v596
    %627 = vst [vmem:[%s7 + $0x60] sm:$0xff] %v601
    %628 = vst [vmem:[%s7 + $0x68] sm:$0xff] %v604
    %629 = vst [vmem:[%s7 + $0x70] sm:$0xff] %v609
    %630 = vst [vmem:[%s7 + $0x78] sm:$0xff] %v612
    // Predicated region
    $region42: #{two_layer_fc.1} parent=1 // pred_check
      _
    $region43: #{two_layer_fc.1} parent=1 // pred_check_branch
      %632 = sbr.rel (0) target = $region45
    $region44: #{two_layer_fc.1} parent=1 // pred_region
      _
    $region45: #{two_layer_fc.1} parent=1 // pred_fallthru
      _
    // Predicated region
    $region46: #{two_layer_fc.1} parent=1 // pred_check
      _
    $region47: #{two_layer_fc.1} parent=1 // pred_check_branch
      %634 = sbr.rel (0) target = $region49
    $region48: #{two_layer_fc.1} parent=1 // pred_region
      _
    $region49: #{two_layer_fc.1} parent=1 // pred_fallthru
      _
    %635 = vsyncpa [#allocation3], 1
    %636 = vsyncpa [#allocation5], 1

</llo_original>
